<compile_context>
chip_gen: v6e
topology: v6e:2x2x1
jax: 0.10.0
libtpu: 0.0.40
codegen_flags: <defaults>
</compile_context>

<pallas_src>
import functools

import jax
import jax.numpy as jnp
from jax import lax
from jax.experimental import pallas as pl
from jax.experimental.pallas import tpu as pltpu

EPS = 1e-8
NEG = -1e30   # masks invalid anchor-positive (i, j) entries
BIG = 1e30    # masks invalid anchor-negative (i, k) entries


def _round_up(x, m):
    return (x + m - 1) // m * m


# ---------------- kernel A: pairwise Euclidean distances (tiled) -------------
def _distance_kernel(xa_ref, xb_ref, dist_ref):
    xa = xa_ref[...]
    xb = xb_ref[...]
    dot = lax.dot_general(xa, xb, (((1,), (1,)), ((), ())),
                          preferred_element_type=jnp.float32)      # (ta, tb)
    # Rows are L2-normalized in the wrapper, so ||x||^2 == 1 for every real row
    # and d^2 = 2 - 2<xi, xj>.  Padded all-zero rows give sqrt(2) here, which is
    # fine because every padded contribution is masked out of kernel B's operands.
    d2 = jnp.maximum(2.0 - 2.0 * dot, 0.0)
    zm = (d2 == 0.0).astype(jnp.float32)
    dist_ref[...] = jnp.sqrt(d2 + zm * EPS) * (1.0 - zm)


# ------------- kernel B: masked triplet sum / count over (j, k, i) -----------
def _triplet_sum_kernel(ap_ref, an_ref, psum_ref, pcnt_ref, *, n_j, unroll):
    @pl.when(pl.program_id(1) == 0)
    def _init():
        psum_ref[...] = jnp.zeros_like(psum_ref)
        pcnt_ref[...] = jnp.zeros_like(pcnt_ref)

    an = an_ref[...]                                   # (tk, ti)  [k-sub, i-lane]
    zero = jnp.zeros(an.shape, jnp.float32)

    def body(j, carry):
        s_acc, c_acc = carry
        ap_j = ap_ref[pl.ds(j, 1), :]                  # (1, ti)  masked d(i,j)+margin
        t = jnp.maximum(ap_j - an, 0.0)                # (tk, ti) fused sub + relu
        return s_acc + t, c_acc + (t > EPS).astype(jnp.float32)

    s_acc, c_acc = lax.fori_loop(0, n_j, body, (zero, zero), unroll=unroll)
    psum_ref[...] += s_acc
    pcnt_ref[...] += c_acc


def _triplet_sum_weighted_kernel(ap_ref, an_ref, bw_ref, psum_ref, pcnt_ref, *,
                                 n_j, unroll):
    @pl.when(pl.program_id(1) == 0)
    def _init():
        psum_ref[...] = jnp.zeros_like(psum_ref)
        pcnt_ref[...] = jnp.zeros_like(pcnt_ref)

    an = an_ref[...]                                   # (tk, ti)
    bw = bw_ref[...]                                   # (tk, ti)  tiled weight pm[i,k]
    zero = jnp.zeros(an.shape, jnp.float32)

    def body(j, carry):
        s_acc, c_acc = carry
        ap_j = ap_ref[pl.ds(j, 1), :]
        t = jnp.maximum(ap_j - an, 0.0) * bw           # count is taken AFTER the weight
        return s_acc + t, c_acc + (t > EPS).astype(jnp.float32)

    s_acc, c_acc = lax.fori_loop(0, n_j, body, (zero, zero), unroll=unroll)
    psum_ref[...] += s_acc
    pcnt_ref[...] += c_acc


def _choose_tiles(N):
    """Returns (N_pad, ti, tk): ti = anchor (lane) tile, tk = negative (sublane) tile."""
    n8 = _round_up(max(N, 8), 8)
    if n8 <= 128:
        return n8, n8, n8                  # single block; full dims are legal tiles
    n_pad = _round_up(N, 128)
    # ti=128 keeps loads/stores lane-dense and gives n_i >= 2 (v7x megacore) for
    # N > 128; tk=64 keeps an/bw + both vreg accumulators + the live chunk well
    # under the 64-vreg register file.  VMEM per step stays a few MiB.
    return n_pad, 128, 64


def batch_all_triplet_loss(output1, output2, weight=None, margin=0.3):
    """JAX/Pallas equivalent of BatchAllTtripletLoss_multi_module_version.forward."""
    B, D = output1.shape
    N = 2 * B
    N_pad, ti, tk = _choose_tiles(N)
    ta = ti
    D_pad = _round_up(D, 128)

    # ---- O(N*D) glue: normalize (torch F.normalize, eps=1e-12), stack, pad ----
    emb = jnp.concatenate([output1, output2], axis=0).astype(jnp.float32)
    norm = jnp.sqrt(jnp.sum(emb * emb, axis=1, keepdims=True))
    emb = emb / jnp.maximum(norm, 1e-12)
    emb = jnp.pad(emb, ((0, N_pad - N), (0, D_pad - D)))

    # ---- kernel A: distance matrix, tiled over (row-block, col-block) ----
    # TODO(synk): also tile the D (contraction) axis for very large embedding dims.
    n_a = N_pad // ta
    dist = pl.pallas_call(
        _distance_kernel,
        out_shape=jax.ShapeDtypeStruct((N_pad, N_pad), jnp.float32),
        grid=(n_a, n_a),
        in_specs=[pl.BlockSpec((ta, D_pad), lambda a, b: (a, 0)),
                  pl.BlockSpec((ta, D_pad), lambda a, b: (b, 0))],
        out_specs=pl.BlockSpec((ta, ta), lambda a, b: (a, b)),
        compiler_params=pltpu.CompilerParams(
            dimension_semantics=("parallel", "parallel"),
            vmem_limit_bytes=32 * 1024 * 1024),
        cost_estimate=pl.CostEstimate(
            flops=2 * N_pad * N_pad * D_pad, transcendentals=0,
            bytes_accessed=4 * (2 * N_pad * D_pad * n_a + N_pad * N_pad)),
    )(emb, emb)

    # ---- O(N^2) glue: fold margin + triplet masks into the 2-D operands ----
    idx = jnp.arange(N_pad)
    valid = idx < N
    labels = jnp.where(valid, idx % B, -(idx + 1))        # padded rows: unique labels
    lab_eq = labels[:, None] == labels[None, :]
    a_mask = (idx[:, None] != idx[None, :]) & lab_eq      # symmetric, like dist
    ap = jnp.where(a_mask, dist + margin, NEG)            # read as [j, i] (symmetric)
    an = jnp.where(jnp.logical_not(lab_eq) & valid[:, None], dist, BIG)   # [k, i]

    # ---- kernel B: O(N^3) masked relu-sum / count, gridded over (i, k) ----
    n_i = N_pad // ti
    n_k = N_pad // tk
    unroll = max(1, min(8, N))
    ap_spec = pl.BlockSpec((N_pad, ti), lambda i, k: (0, i))   # resident across k
    an_spec = pl.BlockSpec((tk, ti), lambda i, k: (k, i))
    out_spec = pl.BlockSpec((tk, ti), lambda i, k: (0, i))     # lane-dense accumulator
    common = dict(
        out_shape=(jax.ShapeDtypeStruct((tk, N_pad), jnp.float32),
                   jax.ShapeDtypeStruct((tk, N_pad), jnp.float32)),
        grid=(n_i, n_k),
        out_specs=(out_spec, out_spec),
        compiler_params=pltpu.CompilerParams(
            dimension_semantics=("parallel", "arbitrary"),
            vmem_limit_bytes=32 * 1024 * 1024),
        cost_estimate=pl.CostEstimate(flops=5 * N * N_pad * N_pad,
                                      transcendentals=0,
                                      bytes_accessed=4 * 3 * N_pad * N_pad),
    )

    # TODO(synk): optional bf16 inner loop on v6e/v7x (2x VALU); kept f32 for accuracy.
    if weight is None:
        kernel = functools.partial(_triplet_sum_kernel, n_j=N, unroll=unroll)
        psum, pcnt = pl.pallas_call(kernel, in_specs=[ap_spec, an_spec],
                                    **common)(ap, an)
    else:
        pm = jnp.tile(weight.astype(jnp.float32), (2, 2))      # pm[i, k]
        bw = jnp.pad(pm.T, ((0, N_pad - N), (0, N_pad - N)))   # [k, i] layout
        bw_spec = pl.BlockSpec((tk, ti), lambda i, k: (k, i))
        kernel = functools.partial(_triplet_sum_weighted_kernel, n_j=N, unroll=unroll)
        psum, pcnt = pl.pallas_call(kernel, in_specs=[ap_spec, an_spec, bw_spec],
                                    **common)(ap, an, bw)

    # Tiny lane-dense partials -> scalar, reduced in the wrapper.
    return jnp.sum(psum) / (jnp.sum(pcnt) + EPS)


# ----------------- pure-JAX reference (for sanity checking) -----------------
def _reference_loss(output1, output2, weight=None, margin=0.3):
    def normalize(x):
        n = jnp.sqrt(jnp.sum(x * x, axis=1, keepdims=True))
        return x / jnp.maximum(n, 1e-12)

    o1 = normalize(output1.astype(jnp.float32))
    o2 = normalize(output2.astype(jnp.float32))
    B = o1.shape[0]
    emb = jnp.concatenate([o1, o2], axis=0)
    labels = jnp.concatenate([jnp.arange(B), jnp.arange(B)])
    dot = emb @ emb.T
    sq = jnp.diag(dot)
    d2 = jnp.maximum(sq[None, :] - 2 * dot + sq[:, None], 0.0)
    zm = (d2 == 0.0).astype(jnp.float32)
    dist = jnp.sqrt(d2 + zm * EPS) * (1.0 - zm)
    tl = dist[:, :, None] - dist[:, None, :] + margin
    N = 2 * B
    idx = jnp.arange(N)
    neq = idx[:, None] != idx[None, :]
    distinct = neq[:, :, None] & neq[:, None, :] & neq[None, :, :]
    leq = labels[:, None] == labels[None, :]
    valid = leq[:, :, None] & (~leq)[:, None, :]
    mask = (distinct & valid).astype(jnp.float32)
    tl = jnp.maximum(tl * mask, 0.0)
    if weight is not None:
        pm = jnp.tile(weight.astype(jnp.float32), (2, 2))
        tl = tl * pm[:, None, :]
    num_pos = jnp.sum((tl > EPS).astype(jnp.float32))
    return jnp.sum(tl) / (num_pos + EPS)


if __name__ == "__main__":
    key = jax.random.PRNGKey(0)
    k1, k2, k3 = jax.random.split(key, 3)

    B, D = 8, 32
    output1 = jax.random.normal(k1, (B, D), dtype=jnp.float32)
    output2 = jax.random.normal(k2, (B, D), dtype=jnp.float32)
    weight = jax.random.uniform(k3, (B, B), dtype=jnp.float32)

    # Plain version (weight=None)
    loss_plain = batch_all_triplet_loss(output1, output2, None, margin=0.3)
    # Weight-punished version
    loss_weighted = batch_all_triplet_loss(output1, output2, weight, margin=0.3)
    jax.block_until_ready((loss_plain, loss_weighted))

    ref_plain = _reference_loss(output1, output2, None, margin=0.3)
    ref_weighted = _reference_loss(output1, output2, weight, margin=0.3)

    assert jnp.allclose(loss_plain, ref_plain, rtol=1e-3, atol=1e-3), (
        loss_plain, ref_plain)
    assert jnp.allclose(loss_weighted, ref_weighted, rtol=1e-3, atol=1e-3), (
        loss_weighted, ref_weighted)

    print("KERNEL_OK")
</pallas_src>

<mosaic_0001>
module attributes {stable_mosaic.version = 11 : i64} {
  func.func @_distance_kernel(%arg0: i32, %arg1: i32, %arg2: memref<16x128xf32, #tpu.memory_space<vmem>>, %arg3: memref<16x128xf32, #tpu.memory_space<vmem>>, %arg4: memref<16x16xf32, #tpu.memory_space<vmem>>) attributes {dimension_semantics = [#tpu.dimension_semantics<parallel>, #tpu.dimension_semantics<parallel>], iteration_bounds = array<i64: 1, 1>, scalar_prefetch = 0 : i64, scratch_operands = 0 : i64, tpu.core_type = #tpu.core_type<tc>, window_params = [{transform_indices = @transform_0, window_bounds = array<i64: 16, 128>}, {transform_indices = @transform_1, window_bounds = array<i64: 16, 128>}, {transform_indices = @transform_2, window_bounds = array<i64: 16, 16>}]} {
    %c0 = arith.constant 0 : index
    %c0_0 = arith.constant 0 : index
    %0 = vector.load %arg2[%c0, %c0_0] : memref<16x128xf32, #tpu.memory_space<vmem>>, vector<16x128xf32>
    %c0_1 = arith.constant 0 : index
    %c0_2 = arith.constant 0 : index
    %1 = vector.load %arg3[%c0_1, %c0_2] : memref<16x128xf32, #tpu.memory_space<vmem>>, vector<16x128xf32>
    %cst = arith.constant dense<0.000000e+00> : vector<16x16xf32>
    %2 = tpu.matmul %0, %1, %cst {dimension_numbers = #tpu.dot_dimension_numbers<[1], [1], [0], [0], [0, 0, 1, 0], [], []>} : vector<16x128xf32>, vector<16x128xf32>, vector<16x16xf32> -> vector<16x16xf32>
    %cst_3 = arith.constant 2.000000e+00 : f32
    %3 = vector.broadcast %cst_3 : f32 to vector<16x16xf32>
    %4 = arith.mulf %3, %2 : vector<16x16xf32>
    %cst_4 = arith.constant 2.000000e+00 : f32
    %5 = vector.broadcast %cst_4 : f32 to vector<16x16xf32>
    %6 = arith.subf %5, %4 : vector<16x16xf32>
    %cst_5 = arith.constant 0.000000e+00 : f32
    %7 = vector.broadcast %cst_5 : f32 to vector<16x16xf32>
    %8 = arith.maximumf %6, %7 : vector<16x16xf32>
    %cst_6 = arith.constant 0.000000e+00 : f32
    %9 = vector.broadcast %cst_6 : f32 to vector<16x16xf32>
    %10 = arith.cmpf oeq, %8, %9 : vector<16x16xf32>
    %11 = arith.extui %10 : vector<16x16xi1> to vector<16x16xi32>
    %12 = arith.sitofp %11 : vector<16x16xi32> to vector<16x16xf32>
    %cst_7 = arith.constant 9.99999993E-9 : f32
    %13 = vector.broadcast %cst_7 : f32 to vector<16x16xf32>
    %14 = arith.mulf %12, %13 : vector<16x16xf32>
    %15 = arith.addf %8, %14 : vector<16x16xf32>
    %16 = math.sqrt %15 : vector<16x16xf32>
    %cst_8 = arith.constant 1.000000e+00 : f32
    %17 = vector.broadcast %cst_8 : f32 to vector<16x16xf32>
    %18 = arith.subf %17, %12 : vector<16x16xf32>
    %19 = arith.mulf %16, %18 : vector<16x16xf32>
    %c0_9 = arith.constant 0 : index
    %c0_10 = arith.constant 0 : index
    %20 = vector.load %arg4[%c0_9, %c0_10] : memref<16x16xf32, #tpu.memory_space<vmem>>, vector<16x16xf32>
    tpu.vector_store %arg4[%c0_9, %c0_10], %19 {strides = array<i32>} : memref<16x16xf32, #tpu.memory_space<vmem>>, vector<16x16xf32>,
    return
  }
  func.func @transform_0(%arg0: i32, %arg1: i32) -> (i32, i32) {
    %c0_i32 = arith.constant 0 : i32
    %c0_i32_0 = arith.constant 0 : i32
    return %arg0, %c0_i32 : i32, i32
  }
  func.func @transform_1(%arg0: i32, %arg1: i32) -> (i32, i32) {
    %c0_i32 = arith.constant 0 : i32
    %c0_i32_0 = arith.constant 0 : i32
    return %arg1, %c0_i32 : i32, i32
  }
  func.func @transform_2(%arg0: i32, %arg1: i32) -> (i32, i32) {
    %c0_i32 = arith.constant 0 : i32
    return %arg0, %arg1 : i32, i32
  }
}

</mosaic_0001>

<llo_original>
// kernel: tpu_custom_call.1
$region0: #{tpu_custom_call.1}
  #allocation0 [shape = 'u32[]', space=smem, size = 0x4, offset = 0x4, fixed_abs, tag = 'smem constant byte address 0x4 - core index']
  #allocation1 [shape = 'u32[144,128]{1,0:T(1,128)}', space=vmem, size = 0x12000, scoped, tag = 'internal scratch']
  %s0 = inlined_call_operand.hbm [shape: f32[16,128], index: 0, kind: input, shape index: {}]
  %s1 = inlined_call_operand.hbm [shape: f32[16,128], index: 1, kind: input, shape index: {}]
  %s2 = inlined_call_operand.hbm [shape: f32[16,16], index: 2, kind: output, shape index: {}]
  %s3 = sld [smem:[#allocation0]]
  $region26: #{tpu_custom_call.1} parent=0
    _
  %s5 = ssub.s32 1, %s3
  %s6 = scalar_select 0, %s5, %s3
  $region1: #{tpu_custom_call.1} parent=0
    #allocation2 [shape = 'u8[8192]{0}', space=vmem, size = 0x2000, scoped, tag = 'input window, operand 0, single buffered']
    #allocation3 [shape = 's32[1]{0}', space=sflag, size = 0x4, scoped, tag = 'scoped memory for tpu_custom_call.1']
    #allocation4 [shape = 's32[1]{0}', space=sflag, size = 0x4, scoped, tag = 'scoped memory for tpu_custom_call.1']
    #allocation5 [shape = 'u8[8192]{0}', space=vmem, size = 0x2000, scoped, tag = 'input window, operand 1, single buffered']
    #allocation6 [shape = 's32[1]{0}', space=sflag, size = 0x4, scoped, tag = 'scoped memory for tpu_custom_call.1']
    #allocation7 [shape = 'u8[8192]{0}', space=vmem, size = 0x2000, scoped, tag = 'output window, operand 0, single buffered']
    %7 = vsyncpa [#allocation3], 0
    %8 = vsyncpa [#allocation6], 0
    %9 = vsyncpa [#allocation4], 0
    // Predicated region
    $region2: #{tpu_custom_call.1} parent=1 // pred_check
      _
    $region3: #{tpu_custom_call.1} parent=1 // pred_check_branch
      %11 = sbr.rel (0) target = $region5
    $region4: #{tpu_custom_call.1} parent=1 // pred_region
      %s13 = ssub.s32 256, 256
      %14 = vsyncadd [#allocation3], %s13
      %s15 = sshll.u32 [#allocation2], 4
      %s16 = int_to_ptr.vmem [resolvable:$true] %s15
      %21 = dma.hbm_to_vmem [thread:$0]  %s0, 256, %s16, [#allocation3], 128, 128, 8
    $region5: #{tpu_custom_call.1} parent=1 // pred_fallthru
      _
    // Predicated region
    $region6: #{tpu_custom_call.1} parent=1 // pred_check
      _
    $region7: #{tpu_custom_call.1} parent=1 // pred_check_branch
      %23 = sbr.rel (0) target = $region9
    $region8: #{tpu_custom_call.1} parent=1 // pred_region
      %s25 = ssub.s32 256, 256
      %26 = vsyncadd [#allocation6], %s25
      %s27 = sshll.u32 [#allocation5], 4
      %s28 = int_to_ptr.vmem [resolvable:$true] %s27
      %33 = dma.hbm_to_vmem [thread:$0]  %s1, 256, %s28, [#allocation6], 128, 128, 8
    $region9: #{tpu_custom_call.1} parent=1 // pred_fallthru
      _
    // Predicated region
    $region10: #{tpu_custom_call.1} parent=1 // pred_check
      _
    $region11: #{tpu_custom_call.1} parent=1 // pred_check_branch
      %35 = sbr.rel (0) target = $region13
    $region12: #{tpu_custom_call.1} parent=1 // pred_region
      %36 = dma.done [#allocation3], 256
    $region13: #{tpu_custom_call.1} parent=1 // pred_fallthru
      _
    // Predicated region
    $region14: #{tpu_custom_call.1} parent=1 // pred_check
      _
    $region15: #{tpu_custom_call.1} parent=1 // pred_check_branch
      %38 = sbr.rel (0) target = $region17
    $region16: #{tpu_custom_call.1} parent=1 // pred_region
      %39 = dma.done [#allocation6], 256
    $region17: #{tpu_custom_call.1} parent=1 // pred_fallthru
      _
    %v40 = vld [vmem:[#allocation2] sm:$0xff]
    %v41 = vld [vmem:[#allocation2 + $0x8] sm:$0xff]
    %v42 = vld [vmem:[#allocation5] sm:$0xff]
    %v43 = vld [vmem:[#allocation5 + $0x8] sm:$0xff]
    %44 = vmatprep.subr.mxu0 0.0
    %45 = vmatpush1.xpose.msra.mxu0 0.0
    %46 = vmatprep.subr.mxu0 0.0
    %47 = vmatpush1.xpose.msra.mxu0 0.0
    %48 = vmatprep.subr.mxu0 0.0
    %49 = vmatpush1.xpose.msra.mxu0 0.0
    %50 = vmatprep.subr.mxu0 0.0
    %51 = vmatpush1.xpose.msra.mxu0 0.0
    %52 = vmatprep.subr.mxu0 0.0
    %53 = vmatpush1.xpose.msra.mxu0 0.0
    %54 = vmatprep.subr.mxu0 0.0
    %55 = vmatpush1.xpose.msra.mxu0 0.0
    %56 = vmatprep.subr.mxu0 0.0
    %57 = vmatpush1.xpose.msra.mxu0 0.0
    %58 = vmatprep.subr.mxu0 0.0
    %59 = vmatpush1.xpose.msra.mxu0 0.0
    %60 = vmatprep.subr.mxu0 0.0
    %61 = vmatpush1.xpose.msra.mxu0 0.0
    %62 = vmatprep.subr.mxu0 0.0
    %63 = vmatpush1.xpose.msra.mxu0 0.0
    %64 = vmatprep.subr.mxu0 0.0
    %65 = vmatpush1.xpose.msra.mxu0 0.0
    %66 = vmatprep.subr.mxu0 0.0
    %67 = vmatpush1.xpose.msra.mxu0 0.0
    %68 = vmatprep.subr.mxu0 0.0
    %69 = vmatpush1.xpose.msra.mxu0 0.0
    %70 = vmatprep.subr.mxu0 0.0
    %71 = vmatpush1.xpose.msra.mxu0 0.0
    %72 = vmatprep.subr.mxu0 0.0
    %73 = vmatpush1.xpose.msra.mxu0 %v43
    %74 = vmatprep.subr.mxu0 0.0
    %75 = vmatpush1.xpose.msra.mxu0 %v42
    %76 = vmatprep.subr.mxu0 0.0
    %77 = vmatpush2.xpose.msra.mxu0 0.0
    %78 = vmatprep.subr.mxu0 0.0
    %79 = vmatpush2.xpose.msra.mxu0 0.0
    %80 = vmatprep.subr.mxu0 0.0
    %81 = vmatpush2.xpose.msra.mxu0 0.0
    %82 = vmatprep.subr.mxu0 0.0
    %83 = vmatpush2.xpose.msra.mxu0 0.0
    %84 = vmatprep.subr.mxu0 0.0
    %85 = vmatpush2.xpose.msra.mxu0 0.0
    %86 = vmatprep.subr.mxu0 0.0
    %87 = vmatpush2.xpose.msra.mxu0 0.0
    %88 = vmatprep.subr.mxu0 0.0
    %89 = vmatpush2.xpose.msra.mxu0 0.0
    %90 = vmatprep.subr.mxu0 0.0
    %91 = vmatpush2.xpose.msra.mxu0 0.0
    %92 = vmatprep.subr.mxu0 0.0
    %93 = vmatpush2.xpose.msra.mxu0 0.0
    %94 = vmatprep.subr.mxu0 0.0
    %95 = vmatpush2.xpose.msra.mxu0 0.0
    %96 = vmatprep.subr.mxu0 0.0
    %97 = vmatpush2.xpose.msra.mxu0 0.0
    %98 = vmatprep.subr.mxu0 0.0
    %99 = vmatpush2.xpose.msra.mxu0 0.0
    %100 = vmatprep.subr.mxu0 0.0
    %101 = vmatpush2.xpose.msra.mxu0 0.0
    %102 = vmatprep.subr.mxu0 0.0
    %103 = vmatpush2.xpose.msra.mxu0 0.0
    %104 = vmatprep.subr.mxu0 0.0
    %105 = vmatpush2.xpose.msra.mxu0 0.0
    %106 = vmatprep.subr.mxu0 0.0
    %107 = vmatpush2.xpose.msra.mxu0 0.0
    %108 = vmatprep.mubr.f32.mxu0 0.0
    %109 = vmatmul.mubr.f32.gmra.mxu0 %v40
    %v110 = vpop.f32.mrf.mxu0
    %v111 = vadd.f32 0.0, %v110
    %v112 = vpop.f32.mrf.mxu0
    %113 = vmatprep.mubr.f32.mxu0 0.0
    %114 = vmatmul.mubr.f32.gmra.mxu0 %v41
    %v115 = vpop.f32.mrf.mxu0
    %v116 = vadd.f32 0.0, %v115
    %v117 = vpop.f32.mrf.mxu0
    %118 = vdwg.mxu0
    %v119 = vmul.f32 %v111, 2.0
    %v120 = vmul.f32 %v116, 2.0
    %v121 = vsub.f32 2.0, %v119
    %v122 = vsub.f32 2.0, %v120
    %v123 = vmax.f32 %v121, 0.0
    %v124 = vmax.f32 %v122, 0.0
    %vm125 = vcmp.eq.f32.partialorder %v123, 0.0
    %vm126 = vcmp.eq.f32.partialorder %v124, 0.0
    %v127 = vsel %vm125, 1, 0
    %v128 = vsel %vm126, 1, 0
    %v129 = vcvt.s32.f32 %v127
    %v130 = vcvt.s32.f32 %v128
    %v131 = vmul.f32 %v129, 1e-08
    %v132 = vmul.f32 %v130, 1e-08
    %v133 = vadd.f32 %v123, %v131
    %v134 = vadd.f32 %v124, %v132
    %v135 = vrsqrt.pop %v133
    %v136 = vmul.f32 %v133, %v135
    %vm137 = vcmp.eq.f32.partialorder %v133, inf
    %v138 = vsel %vm137, %v133, %v136
    %vm139 = vcmp.eq.f32.partialorder %v133, 0.0
    %v140 = vand.u32 %v133, 2147483648
    %v141 = vsel %vm139, %v140, %v138
    %v142 = vrsqrt.pop %v134
    %v143 = vmul.f32 %v134, %v142
    %vm144 = vcmp.eq.f32.partialorder %v134, inf
    %v145 = vsel %vm144, %v134, %v143
    %vm146 = vcmp.eq.f32.partialorder %v134, 0.0
    %v147 = vand.u32 %v134, 2147483648
    %v148 = vsel %vm146, %v147, %v145
    %v149 = vsub.f32 1.0, %v129
    %v150 = vsub.f32 1.0, %v130
    %v151 = vmul.f32 %v141, %v149
    %v152 = vmul.f32 %v148, %v150
    %vm153 = vcmask 130048
    %154 = vst.msk [vmem:[#allocation7] sm:$0xff] %vm153, %v151
    %155 = vst.msk [vmem:[#allocation7 + $0x8] sm:$0xff] %vm153, %v152
    // Predicated region
    $region18: #{tpu_custom_call.1} parent=1 // pred_check
      _
    $region19: #{tpu_custom_call.1} parent=1 // pred_check_branch
      %157 = sbr.rel (0) target = $region21
    $region20: #{tpu_custom_call.1} parent=1 // pred_region
      %s159 = ssub.s32 256, 256
      %160 = vsyncadd [#allocation4], %s159
      %s161 = sshll.u32 [#allocation7], 4
      %s162 = int_to_ptr.vmem [resolvable:$true] %s161
      %167 = dma.vmem_to_hbm [thread:$0]  %s162, 256, %s2, [#allocation4], 128, 128, 8
    $region21: #{tpu_custom_call.1} parent=1 // pred_fallthru
      _
    // Predicated region
    $region22: #{tpu_custom_call.1} parent=1 // pred_check
      _
    $region23: #{tpu_custom_call.1} parent=1 // pred_check_branch
      %169 = sbr.rel (0) target = $region25
    $region24: #{tpu_custom_call.1} parent=1 // pred_region
      %170 = dma.done [#allocation4], 256
    $region25: #{tpu_custom_call.1} parent=1 // pred_fallthru
      _
    %171 = vsyncpa [#allocation3], 1
    %172 = vsyncpa [#allocation6], 1
    %173 = vsyncpa [#allocation4], 1

</llo_original>
